<compile_context>
chip_gen: v6e
topology: v6e:2x2x1
jax: 0.10.0
libtpu: 0.0.40
codegen_flags: <defaults>
</compile_context>

<pallas_src>
import jax
import jax.numpy as jnp
from jax.experimental import pallas as pl
from jax.experimental.pallas import tpu as pltpu

_LANES = 128
_MAX_BLOCK_ROWS = 1024  # 1024 x 128 f32 = 512 KiB per input tile


def _make_logloss_kernel(rows_total: int, block_rows: int, inv_bs: float):
    # Static at trace time: does the last row-block need masking?
    needs_mask = (rows_total % block_rows) != 0

    def kernel(pred_ref, target_ref, out_ref, acc_p, acc_t):
        i = pl.program_id(0)
        last = pl.num_programs(0) - 1

        @pl.when(i == 0)
        def _init():
            acc_p[...] = jnp.zeros_like(acc_p)
            acc_t[...] = jnp.zeros_like(acc_t)

        def _accumulate(masked: bool):
            p = pred_ref[...].astype(jnp.float32)
            t = target_ref[...].astype(jnp.float32)
            if masked:
                rem = rows_total - i * block_rows  # valid rows in this block
                row_ids = jax.lax.broadcasted_iota(
                    jnp.int32, (block_rows, _LANES), 0
                )
                keep = row_ids < rem
                p = jnp.where(keep, p, 0.0)
                t = jnp.where(keep, t, 0.0)
            # Sublane-only reduction: keep 128 lane-parallel partial sums;
            # the cross-lane reduce is deferred to the final step.
            acc_p[...] += jnp.sum(p, axis=0, keepdims=True)
            acc_t[...] += jnp.sum(t, axis=0, keepdims=True)

        if needs_mask:
            # Only the last block can be ragged.
            @pl.when(i < last)
            def _():
                _accumulate(masked=False)

            @pl.when(i == last)
            def _():
                _accumulate(masked=True)
        else:
            _accumulate(masked=False)

        @pl.when(i == last)
        def _finalize():
            p_sum = jnp.sum(acc_p[...])
            t_sum = jnp.sum(acc_t[...])
            out_ref[0, 0] = (
                jnp.abs(jnp.log(p_sum) - jnp.log(t_sum)) * inv_bs
            )

    return kernel


def _to_lane_rows(x):
    """Flatten to (rows, 128). Copy-free when size % 128 == 0."""
    x = x.reshape(-1)
    n = x.shape[0]
    rem = n % _LANES
    if rem:
        # Only when the flat size is not lane-aligned (rare); zero padding is
        # safe because the reduction is a plain sum.
        x = jnp.pad(x, (0, _LANES - rem))
    return x.reshape(-1, _LANES)


def log_loss(pred, target):
    """|log(sum(pred)) - log(sum(target))| / pred.shape[0]  (scalar f32)."""
    assert pred.size == target.size, "pred/target must have the same size"
    bs = pred.shape[0]
    inv_bs = 1.0 / float(bs)

    p2 = _to_lane_rows(pred)
    t2 = _to_lane_rows(target)
    rows = p2.shape[0]

    # Biggest tile that fits comfortably; full-extent block for small inputs
    # (full-extent second-to-last dim is always legal).
    block_rows = min(_MAX_BLOCK_ROWS, rows)
    grid = (pl.cdiv(rows, block_rows),)

    result = pl.pallas_call(
        _make_logloss_kernel(rows, block_rows, inv_bs),
        out_shape=jax.ShapeDtypeStruct((1, 1), jnp.float32),
        grid_spec=pltpu.PrefetchScalarGridSpec(
            num_scalar_prefetch=0,
            grid=grid,
            in_specs=[
                pl.BlockSpec((block_rows, _LANES), lambda i: (i, 0)),
                pl.BlockSpec((block_rows, _LANES), lambda i: (i, 0)),
            ],
            out_specs=pl.BlockSpec(memory_space=pltpu.SMEM),
            scratch_shapes=[
                pltpu.VMEM((1, _LANES), jnp.float32),  # pred lane accumulator
                pltpu.VMEM((1, _LANES), jnp.float32),  # target lane accumulator
            ],
        ),
        compiler_params=pltpu.CompilerParams(
            dimension_semantics=("arbitrary",),
        ),
    )(p2, t2)

    # TODO(synk): optional v7x-only 2-TensorCore split (parallel leading grid
    # axis with per-core partial sums) left out to keep a single portable path.
    return result[0, 0]


if __name__ == "__main__":
    key = jax.random.PRNGKey(0)
    k1, k2 = jax.random.split(key)

    # NCHW inputs; values kept strictly positive so log() is well defined
    # (matches the module's documented intent).
    pred = jax.random.uniform(k1, (2, 4, 16, 16), jnp.float32, 0.1, 1.0)
    target = jax.random.uniform(k2, (2, 4, 16, 16), jnp.float32, 0.1, 1.0)

    loss = jax.block_until_ready(log_loss(pred, target))

    # Pure-JAX reference check.
    ref = jnp.abs(jnp.log(jnp.sum(pred)) - jnp.log(jnp.sum(target))) / pred.shape[0]
    assert jnp.allclose(loss, ref, rtol=1e-5, atol=1e-6), (loss, ref)

    print("KERNEL_OK")
</pallas_src>

<mosaic_0001>
module attributes {stable_mosaic.version = 11 : i64} {
  func.func @kernel(%arg0: i32, %arg1: memref<16x128xf32, #tpu.memory_space<vmem>>, %arg2: memref<16x128xf32, #tpu.memory_space<vmem>>, %arg3: memref<1x1xf32, #tpu.memory_space<smem>>, %arg4: memref<1x128xf32, #tpu.memory_space<vmem>>, %arg5: memref<1x128xf32, #tpu.memory_space<vmem>>) attributes {dimension_semantics = [#tpu.dimension_semantics<arbitrary>], iteration_bounds = array<i64: 1>, scalar_prefetch = 0 : i64, scratch_operands = 2 : i64, tpu.core_type = #tpu.core_type<tc>, window_params = [{transform_indices = @transform_0, window_bounds = array<i64: 16, 128>}, {transform_indices = @transform_1, window_bounds = array<i64: 16, 128>}, {transform_indices = @transform_2, window_bounds = array<i64: 1, 1>}]} {
    %c0_i32 = arith.constant 0 : i32
    %0 = arith.cmpi eq, %arg0, %c0_i32 : i32
    %1 = arith.extui %0 : i1 to i32
    %c0_i32_0 = arith.constant 0 : i32
    %2 = arith.cmpi ne, %1, %c0_i32_0 : i32
    scf.if %2 {
      %cst_15 = arith.constant 0.000000e+00 : f32
      %18 = vector.broadcast %cst_15 : f32 to vector<1x128xf32>
      %c0_16 = arith.constant 0 : index
      %c0_17 = arith.constant 0 : index
      %19 = vector.load %arg4[%c0_16, %c0_17] : memref<1x128xf32, #tpu.memory_space<vmem>>, vector<1x128xf32>
      tpu.vector_store %arg4[%c0_16, %c0_17], %18 {strides = array<i32>} : memref<1x128xf32, #tpu.memory_space<vmem>>, vector<1x128xf32>,
      %cst_18 = arith.constant 0.000000e+00 : f32
      %20 = vector.broadcast %cst_18 : f32 to vector<1x128xf32>
      %c0_19 = arith.constant 0 : index
      %c0_20 = arith.constant 0 : index
      %21 = vector.load %arg5[%c0_19, %c0_20] : memref<1x128xf32, #tpu.memory_space<vmem>>, vector<1x128xf32>
      tpu.vector_store %arg5[%c0_19, %c0_20], %20 {strides = array<i32>} : memref<1x128xf32, #tpu.memory_space<vmem>>, vector<1x128xf32>,
    } else {
    }
    %c0 = arith.constant 0 : index
    %c0_1 = arith.constant 0 : index
    %3 = vector.load %arg1[%c0, %c0_1] : memref<16x128xf32, #tpu.memory_space<vmem>>, vector<16x128xf32>
    %c0_2 = arith.constant 0 : index
    %c0_3 = arith.constant 0 : index
    %4 = vector.load %arg2[%c0_2, %c0_3] : memref<16x128xf32, #tpu.memory_space<vmem>>, vector<16x128xf32>
    %c0_4 = arith.constant 0 : index
    %c0_5 = arith.constant 0 : index
    %5 = vector.load %arg4[%c0_4, %c0_5] : memref<1x128xf32, #tpu.memory_space<vmem>>, vector<1x128xf32>
    %cst = arith.constant dense<0.000000e+00> : vector<128xf32>
    %6 = vector.multi_reduction <add>, %3, %cst [0] : vector<16x128xf32> to vector<128xf32>
    %7 = vector.shape_cast %6 : vector<128xf32> to vector<1x128xf32>
    %8 = arith.addf %5, %7 : vector<1x128xf32>
    %c0_6 = arith.constant 0 : index
    %c0_7 = arith.constant 0 : index
    %9 = vector.load %arg4[%c0_6, %c0_7] : memref<1x128xf32, #tpu.memory_space<vmem>>, vector<1x128xf32>
    tpu.vector_store %arg4[%c0_6, %c0_7], %8 {strides = array<i32>} : memref<1x128xf32, #tpu.memory_space<vmem>>, vector<1x128xf32>,
    %c0_8 = arith.constant 0 : index
    %c0_9 = arith.constant 0 : index
    %10 = vector.load %arg5[%c0_8, %c0_9] : memref<1x128xf32, #tpu.memory_space<vmem>>, vector<1x128xf32>
    %cst_10 = arith.constant dense<0.000000e+00> : vector<128xf32>
    %11 = vector.multi_reduction <add>, %4, %cst_10 [0] : vector<16x128xf32> to vector<128xf32>
    %12 = vector.shape_cast %11 : vector<128xf32> to vector<1x128xf32>
    %13 = arith.addf %10, %12 : vector<1x128xf32>
    %c0_11 = arith.constant 0 : index
    %c0_12 = arith.constant 0 : index
    %14 = vector.load %arg5[%c0_11, %c0_12] : memref<1x128xf32, #tpu.memory_space<vmem>>, vector<1x128xf32>
    tpu.vector_store %arg5[%c0_11, %c0_12], %13 {strides = array<i32>} : memref<1x128xf32, #tpu.memory_space<vmem>>, vector<1x128xf32>,
    %c0_i32_13 = arith.constant 0 : i32
    %15 = arith.cmpi eq, %arg0, %c0_i32_13 : i32
    %16 = arith.extui %15 : i1 to i32
    %c0_i32_14 = arith.constant 0 : i32
    %17 = arith.cmpi ne, %16, %c0_i32_14 : i32
    scf.if %17 {
      %c0_15 = arith.constant 0 : index
      %c0_16 = arith.constant 0 : index
      %18 = vector.load %arg4[%c0_15, %c0_16] : memref<1x128xf32, #tpu.memory_space<vmem>>, vector<1x128xf32>
      %19 = vector.shape_cast %18 : vector<1x128xf32> to vector<1x1x128xf32>
      %cst_17 = arith.constant dense<0.000000e+00> : vector<1xf32>
      %20 = vector.multi_reduction <add>, %19, %cst_17 [1, 2] : vector<1x1x128xf32> to vector<1xf32>
      %21 = vector.shape_cast %20 : vector<1xf32> to vector<1x1x1xf32>
      %22 = vector.extract %21[0, 0, 0] : f32 from vector<1x1x1xf32>
      %c0_18 = arith.constant 0 : index
      %c0_19 = arith.constant 0 : index
      %23 = vector.load %arg5[%c0_18, %c0_19] : memref<1x128xf32, #tpu.memory_space<vmem>>, vector<1x128xf32>
      %24 = vector.shape_cast %23 : vector<1x128xf32> to vector<1x1x128xf32>
      %cst_20 = arith.constant dense<0.000000e+00> : vector<1xf32>
      %25 = vector.multi_reduction <add>, %24, %cst_20 [1, 2] : vector<1x1x128xf32> to vector<1xf32>
      %26 = vector.shape_cast %25 : vector<1xf32> to vector<1x1x1xf32>
      %27 = vector.extract %26[0, 0, 0] : f32 from vector<1x1x1xf32>
      %28 = math.log %22 : f32
      %29 = math.log %27 : f32
      %30 = arith.subf %28, %29 : f32
      %31 = math.absf %30 : f32
      %cst_21 = arith.constant 5.000000e-01 : f32
      %32 = arith.mulf %31, %cst_21 : f32
      %c0_22 = arith.constant 0 : index
      %c0_23 = arith.constant 0 : index
      %33 = memref.load %arg3[%c0_22, %c0_23] : memref<1x1xf32, #tpu.memory_space<smem>>
      memref.store %32, %arg3[%c0_22, %c0_23] : memref<1x1xf32, #tpu.memory_space<smem>>
    } else {
    }
    return
  }
  func.func @transform_0(%arg0: i32) -> (i32, i32) {
    %c0_i32 = arith.constant 0 : i32
    %c0_i32_0 = arith.constant 0 : i32
    return %arg0, %c0_i32 : i32, i32
  }
  func.func @transform_1(%arg0: i32) -> (i32, i32) {
    %c0_i32 = arith.constant 0 : i32
    %c0_i32_0 = arith.constant 0 : i32
    return %arg0, %c0_i32 : i32, i32
  }
  func.func @transform_2(%arg0: i32) -> (i32, i32) {
    %c0_i32 = arith.constant 0 : i32
    %c0_i32_0 = arith.constant 0 : i32
    %c0_i32_1 = arith.constant 0 : i32
    return %c0_i32, %c0_i32_0 : i32, i32
  }
}

</mosaic_0001>

<llo_original>
// kernel: tpu_custom_call.1
$region0: #{tpu_custom_call.1}
  #allocation0 [shape = 'u32[]', space=smem, size = 0x4, offset = 0x4, fixed_abs, tag = 'smem constant byte address 0x4 - core index']
  #allocation1 [shape = 'u32[144,128]{1,0:T(1,128)}', space=vmem, size = 0x12000, scoped, tag = 'internal scratch']
  #allocation2 [shape = 'f32[1,128]{1,0:T(1,128)}', space=vmem, size = 0x200, scoped, tag = 'scratch operand']
  #allocation3 [shape = 'f32[1,128]{1,0:T(1,128)}', space=vmem, size = 0x200, scoped, tag = 'scratch operand']
  %s0 = inlined_call_operand.hbm [shape: f32[16,128], index: 0, kind: input, shape index: {}]
  %s1 = inlined_call_operand.hbm [shape: f32[16,128], index: 1, kind: input, shape index: {}]
  %s2 = inlined_call_operand.hbm [shape: f32[1,1], index: 2, kind: output, shape index: {}]
  %s3 = sld [smem:[#allocation0]]
  $region34: #{tpu_custom_call.1} parent=0
    _
  %s5 = ssub.s32 1, %s3
  %s6 = scalar_select 0, %s5, %s3
  $region1: #{tpu_custom_call.1} parent=0
    #allocation4 [shape = 'u8[8192]{0}', space=vmem, size = 0x2000, scoped, tag = 'input window, operand 0, single buffered']
    #allocation5 [shape = 's32[1]{0}', space=sflag, size = 0x4, scoped, tag = 'scoped memory for tpu_custom_call.1']
    #allocation6 [shape = 's32[1]{0}', space=sflag, size = 0x4, scoped, tag = 'scoped memory for tpu_custom_call.1']
    #allocation7 [shape = 'u8[8192]{0}', space=vmem, size = 0x2000, scoped, tag = 'input window, operand 1, single buffered']
    #allocation8 [shape = 's32[1]{0}', space=sflag, size = 0x4, scoped, tag = 'scoped memory for tpu_custom_call.1']
    #allocation9 [shape = 'u8[512]{0}', space=smem, size = 0x200, scoped, tag = 'output window, operand 0, single buffered']
    %7 = vsyncpa [#allocation5], 0
    %8 = vsyncpa [#allocation8], 0
    %9 = vsyncpa [#allocation6], 0
    // Predicated region
    $region2: #{tpu_custom_call.1} parent=1 // pred_check
      _
    $region3: #{tpu_custom_call.1} parent=1 // pred_check_branch
      %11 = sbr.rel (0) target = $region5
    $region4: #{tpu_custom_call.1} parent=1 // pred_region
      %s13 = ssub.s32 256, 256
      %14 = vsyncadd [#allocation5], %s13
      %s15 = sshll.u32 [#allocation4], 4
      %s16 = int_to_ptr.vmem [resolvable:$true] %s15
      %21 = dma.hbm_to_vmem [thread:$0]  %s0, 256, %s16, [#allocation5], 128, 128, 8
    $region5: #{tpu_custom_call.1} parent=1 // pred_fallthru
      _
    // Predicated region
    $region6: #{tpu_custom_call.1} parent=1 // pred_check
      _
    $region7: #{tpu_custom_call.1} parent=1 // pred_check_branch
      %23 = sbr.rel (0) target = $region9
    $region8: #{tpu_custom_call.1} parent=1 // pred_region
      %s25 = ssub.s32 256, 256
      %26 = vsyncadd [#allocation8], %s25
      %s27 = sshll.u32 [#allocation7], 4
      %s28 = int_to_ptr.vmem [resolvable:$true] %s27
      %33 = dma.hbm_to_vmem [thread:$0]  %s1, 256, %s28, [#allocation8], 128, 128, 8
    $region9: #{tpu_custom_call.1} parent=1 // pred_fallthru
      _
    // Predicated region
    $region10: #{tpu_custom_call.1} parent=1 // pred_check
      _
    $region11: #{tpu_custom_call.1} parent=1 // pred_check_branch
      %35 = sbr.rel (0) target = $region13
    $region12: #{tpu_custom_call.1} parent=1 // pred_region
      %36 = dma.done [#allocation5], 256
    $region13: #{tpu_custom_call.1} parent=1 // pred_fallthru
      _
    // Predicated region
    $region14: #{tpu_custom_call.1} parent=1 // pred_check
      _
    $region15: #{tpu_custom_call.1} parent=1 // pred_check_branch
      %38 = sbr.rel (0) target = $region17
    $region16: #{tpu_custom_call.1} parent=1 // pred_region
      %39 = dma.done [#allocation8], 256
    $region17: #{tpu_custom_call.1} parent=1 // pred_fallthru
      _
    %p40 = scmp.eq.s32.totalorder 0, 0
    // Predicated region
    $region18: #{tpu_custom_call.1} parent=1 // pred_check
      %p41 = pneg %p40
    $region19: #{tpu_custom_call.1} parent=1 // pred_check_branch
      %43 = sbr.rel (%p41) target = $region21
    $region20: #{tpu_custom_call.1} parent=1 // pred_region
      %44 = vst [vmem:[#allocation2] sm:$0x1] 0.0
      %45 = vst [vmem:[#allocation3] sm:$0x1] 0.0
    $region21: #{tpu_custom_call.1} parent=1 // pred_fallthru
      _
    %v46 = vld [vmem:[#allocation4] sm:$0xff]
    %v47 = vld [vmem:[#allocation4 + $0x8] sm:$0xff]
    %v48 = vld [vmem:[#allocation7] sm:$0xff]
    %v49 = vld [vmem:[#allocation7 + $0x8] sm:$0xff]
    %v50 = vld [vmem:[#allocation2] sm:$0x1]
    %v51 = vadd.f32 %v46, %v47
    %v52 = vrot.slane %v51, 4
    %v53 = vadd.f32 %v51, %v52
    %v54 = vrot.slane %v53, 2
    %v55 = vadd.f32 %v53, %v54
    %v56 = vrot.slane %v55, 1
    %v57 = vadd.f32 %v55, %v56
    %v58 = vadd.f32 %v50, %v57
    %59 = vst [vmem:[#allocation2] sm:$0x1] %v58
    %v60 = vld [vmem:[#allocation3] sm:$0x1]
    %v61 = vadd.f32 %v48, %v49
    %v62 = vrot.slane %v61, 4
    %v63 = vadd.f32 %v61, %v62
    %v64 = vrot.slane %v63, 2
    %v65 = vadd.f32 %v63, %v64
    %v66 = vrot.slane %v65, 1
    %v67 = vadd.f32 %v65, %v66
    %v68 = vadd.f32 %v60, %v67
    %69 = vst [vmem:[#allocation3] sm:$0x1] %v68
    // Predicated region
    $region22: #{tpu_custom_call.1} parent=1 // pred_check
      %p70 = pneg %p40
    $region23: #{tpu_custom_call.1} parent=1 // pred_check_branch
      %72 = sbr.rel (%p70) target = $region25
    $region24: #{tpu_custom_call.1} parent=1 // pred_region
      %v73 = vld [vmem:[#allocation2] sm:$0x1]
      %vm74 = vcmask 1040384
      %v75 = vsel %vm74, %v73, 0.0
      %76 = vadd.xlane.f32.xlu0 %v75
      %v77 = vpop.xlane.xlu0 %76
      %v78 = vrot.slane %v77, 4
      %v79 = vadd.f32 %v77, %v78
      %v80 = vrot.slane %v79, 2
      %v81 = vadd.f32 %v79, %v80
      %v82 = vrot.slane %v81, 1
      %v83 = vadd.f32 %v81, %v82
      %s84 = vtos %v83
      %v85 = vld [vmem:[#allocation3] sm:$0x1]
      %v86 = vsel %vm74, %v85, 0.0
      %87 = vadd.xlane.f32.xlu0 %v86
      %v88 = vpop.xlane.xlu0 %87
      %v89 = vrot.slane %v88, 4
      %v90 = vadd.f32 %v88, %v89
      %v91 = vrot.slane %v90, 2
      %v92 = vadd.f32 %v90, %v91
      %v93 = vrot.slane %v92, 1
      %v94 = vadd.f32 %v92, %v93
      %s95 = vtos %v94
      %v96 = vstv %s84
      %v97 = vlog2.pop %v96
      %v98 = vmul.f32 %v97, 0.6931472
      %s99 = vtos %v98
      %v100 = vstv %s95
      %v101 = vlog2.pop %v100
      %v102 = vmul.f32 %v101, 0.6931472
      %s103 = vtos %v102
      %s104 = ssub.f32 %s99, %s103
      %s105 = sand.u32 2147483647, %s104
      %s106 = smul.f32 %s105, 0.5
      %s107 = scalar_lea.smem [#allocation9], 0
      %108 = sst [smem:[%s107]] %s106
    $region25: #{tpu_custom_call.1} parent=1 // pred_fallthru
      _
    // Predicated region
    $region26: #{tpu_custom_call.1} parent=1 // pred_check
      _
    $region27: #{tpu_custom_call.1} parent=1 // pred_check_branch
      %110 = sbr.rel (0) target = $region29
    $region28: #{tpu_custom_call.1} parent=1 // pred_region
      %s112 = ssub.s32 16, 16
      %113 = vsyncadd [#allocation6], %s112
      %116 = dma.smem_to_hbm [#allocation9], 16, %s2, [#allocation6]
    $region29: #{tpu_custom_call.1} parent=1 // pred_fallthru
      _
    // Predicated region
    $region30: #{tpu_custom_call.1} parent=1 // pred_check
      _
    $region31: #{tpu_custom_call.1} parent=1 // pred_check_branch
      %118 = sbr.rel (0) target = $region33
    $region32: #{tpu_custom_call.1} parent=1 // pred_region
      %119 = dma.done [#allocation6], 16
    $region33: #{tpu_custom_call.1} parent=1 // pred_fallthru
      _
    %120 = sfence
    %121 = vsyncpa [#allocation5], 1
    %122 = vsyncpa [#allocation8], 1
    %123 = vsyncpa [#allocation6], 1

</llo_original>
